<compile_context>
chip_gen: v7x
topology: tpu7x:2x2x1
jax: 0.10.0
libtpu: 0.0.40
codegen_flags: <defaults>
</compile_context>

<pallas_src>
from functools import partial

import jax
import jax.numpy as jnp
from jax import lax
from jax.experimental import pallas as pl
from jax.experimental.pallas import tpu as pltpu

_SUB = 8  # f32 sublanes per vreg: tap-group row alignment


def _make_conv3x3_relu_kernel(H, W, Cin, Cg):
    """Kernel closure with static spatial / channel dims.

    Patch-row layout (matches w_mat columns built in the wrapper):
      group t = tap (kh, kw), t = kh*3 + kw, occupies rows [t*Cg, (t+1)*Cg):
        rows [t*Cg, t*Cg+Cin)  : input channels, shifted by (kh-1, kw-1)
        row   t*Cg+Cin (t==0)  : all-ones bias row (if Cg > Cin)
        remaining rows         : zeros
      if Cg == Cin an extra 8-row group is appended with the ones row first.
    """
    HW = H * W
    taps = [(kh - 1, kw - 1) for kh in range(3) for kw in range(3)]
    pad_rows = Cg - Cin

    def kernel(x_ref, w_ref, m_ref, o_ref):
        # x_ref: (NB, Cin, H*W)   NB images, channels on sublanes, pixels on lanes
        # w_ref: (Cout, K)        weights (+ folded bias column), zero-padded per group
        # m_ref: (9, H*W)         per-tap validity masks (center tap row is all ones)
        # o_ref: (NB, Cout, H*W)  lane-dense output
        NB = x_ref.shape[0]
        L = NB * HW
        dtype = x_ref.dtype

        masks = m_ref[...]                                   # (9, HW)
        x_imgs = [x_ref[n] for n in range(NB)]               # NB x (Cin, HW)

        # Constant padding rows (built once; compiler constant-folds them).
        ones_row = jnp.ones((1, L), dtype)
        if pad_rows > 0:
            pad_zero = jnp.zeros((pad_rows, L), dtype)
            if pad_rows == 1:
                pad_bias = ones_row
            else:
                pad_bias = jnp.concatenate(
                    [ones_row, jnp.zeros((pad_rows - 1, L), dtype)], axis=0)

        groups = []
        for t, (dh, dw) in enumerate(taps):
            delta = dh * W + dw
            mt = masks[t:t + 1, :]                            # (1, HW)
            cols = []
            for n in range(NB):
                tap = x_imgs[n]
                if delta != 0:
                    # y[:, p] = x[:, p + delta] for valid p, 0 elsewhere.
                    tap = pltpu.roll(tap, shift=(-delta) % HW, axis=1) * mt
                cols.append(tap)
            g = cols[0] if NB == 1 else jnp.concatenate(cols, axis=1)  # (Cin, L)
            if pad_rows > 0:
                g = jnp.concatenate(
                    [g, pad_bias if t == 0 else pad_zero], axis=0)     # (Cg, L)
            groups.append(g)

        if pad_rows == 0:
            # No padding room for the bias row: dedicated 8-row bias group.
            groups.append(jnp.concatenate(
                [ones_row, jnp.zeros((_SUB - 1, L), dtype)], axis=0))

        patches = jnp.concatenate(groups, axis=0)             # (K, L), 8-aligned groups

        # Single MXU contraction; bias is folded in via the ones row.
        acc = jnp.dot(w_ref[...], patches,
                      preferred_element_type=jnp.float32)     # (Cout, L) f32
        acc = jnp.maximum(acc, 0.0)                           # ReLU

        for n in range(NB):
            o_ref[n] = acc[:, n * HW:(n + 1) * HW].astype(o_ref.dtype)

    return kernel


@partial(jax.jit, static_argnames=("num_blocks",))
def conv_block_pallas(x_nchw, w_oihw, bias, *, num_blocks=1):
    """Conv2d(k=3, pad=1) + ReLU.  x_nchw: (N, Cin, H, W) -> (N, Cout, H, W).

    num_blocks: number of grid steps the batch is split into.
      * v5e / v6e (single TensorCore): keep 1 (fewest grid steps wins).
      * v7x (2 TensorCores): use 2 so both cores get a 'parallel' step.
    """
    N, Cin, H, W = x_nchw.shape
    Cout = w_oihw.shape[0]
    HW = H * W
    if N % num_blocks != 0:
        raise ValueError("num_blocks must divide the batch size")
    NB = N // num_blocks

    Cg = ((Cin + _SUB - 1) // _SUB) * _SUB        # rows per tap group (8-aligned)
    pad_rows = Cg - Cin
    K = 9 * Cg + (0 if pad_rows > 0 else _SUB)

    # Free contiguous reshape (no transpose, no pad): NCHW -> (N, Cin, H*W).
    x2 = x_nchw.reshape(N, Cin, HW)

    # OIHW -> (Cout, K): column order (tap, cin) with zero padding to Cg per
    # tap group, bias folded into the column matching the in-kernel ones row.
    w_tap = jnp.transpose(w_oihw.reshape(Cout, Cin, 9), (0, 2, 1))   # (Cout, 9, Cin)
    w_tap = jnp.pad(w_tap, ((0, 0), (0, 0), (0, pad_rows)))          # (Cout, 9, Cg)
    w_mat = w_tap.reshape(Cout, 9 * Cg).astype(x_nchw.dtype)
    if pad_rows > 0:
        w_mat = w_mat.at[:, Cin].set(bias.astype(w_mat.dtype))       # tap-0 pad row
    else:
        extra = jnp.zeros((Cout, _SUB), w_mat.dtype).at[:, 0].set(bias.astype(w_mat.dtype))
        w_mat = jnp.concatenate([w_mat, extra], axis=1)

    # Precomputed per-tap boundary masks (compile-time constants under jit).
    hh = jnp.arange(HW, dtype=jnp.int32) // W
    ww = jnp.arange(HW, dtype=jnp.int32) % W
    mask_rows = []
    for kh in range(3):
        for kw in range(3):
            dh, dw = kh - 1, kw - 1
            valid = ((hh + dh >= 0) & (hh + dh < H) &
                     (ww + dw >= 0) & (ww + dw < W))
            mask_rows.append(valid)
    masks = jnp.stack(mask_rows).astype(x_nchw.dtype)                # (9, HW)

    out = pl.pallas_call(
        _make_conv3x3_relu_kernel(H, W, Cin, Cg),
        out_shape=jax.ShapeDtypeStruct((N, Cout, HW), x_nchw.dtype),
        grid=(num_blocks,),
        in_specs=[
            pl.BlockSpec((NB, Cin, HW), lambda n: (n, 0, 0)),
            pl.BlockSpec((Cout, K), lambda n: (0, 0)),
            pl.BlockSpec((9, HW), lambda n: (0, 0)),
        ],
        out_specs=pl.BlockSpec((NB, Cout, HW), lambda n: (n, 0, 0)),
        compiler_params=pltpu.CompilerParams(
            # 'parallel' only matters on v7x (2 TCs); on v5e/v6e the grid is a
            # sequential loop and the batch-fold (num_blocks=1) is the lever.
            dimension_semantics=("parallel",)),
    )(x2, w_mat, masks)

    # Free contiguous reshape back to NCHW (matches PyTorch convention).
    return out.reshape(N, Cout, H, W)


def _reference(x_nchw, w_oihw, bias):
    y = lax.conv_general_dilated(
        x_nchw, w_oihw, window_strides=(1, 1), padding=((1, 1), (1, 1)),
        dimension_numbers=("NCHW", "OIHW", "NCHW"))
    y = y + bias.reshape(1, -1, 1, 1)
    return jnp.maximum(y, 0.0)


if __name__ == "__main__":
    # Small shapes consistent with the module: convolutionBlock(4, 8) on (2,4,16,16).
    N, Cin, Cout, H, W = 2, 4, 8, 16, 16

    key = jax.random.PRNGKey(0)
    kx, kw, kb = jax.random.split(key, 3)

    x = jax.random.normal(kx, (N, Cin, H, W), dtype=jnp.float32)

    # PyTorch-style uniform(-1/sqrt(fan_in), 1/sqrt(fan_in)) init.
    fan_in = Cin * 3 * 3
    bound = 1.0 / (fan_in ** 0.5)
    w = jax.random.uniform(kw, (Cout, Cin, 3, 3), dtype=jnp.float32,
                           minval=-bound, maxval=bound)
    b = jax.random.uniform(kb, (Cout,), dtype=jnp.float32,
                           minval=-bound, maxval=bound)

    ref = jax.block_until_ready(_reference(x, w, b))

    # Default path: whole batch folded into a single grid step (v5e/v6e).
    out = jax.block_until_ready(conv_block_pallas(x, w, b))
    assert out.shape == (N, Cout, H, W)
    assert jnp.allclose(out, ref, atol=1e-4, rtol=1e-4)

    # v7x megacore path: batch split into 2 'parallel' grid steps.
    out2 = jax.block_until_ready(conv_block_pallas(x, w, b, num_blocks=2))
    assert jnp.allclose(out2, ref, atol=1e-4, rtol=1e-4)

    print("KERNEL_OK")
</pallas_src>

<mosaic_0001>
module attributes {stable_mosaic.version = 11 : i64} {
  func.func @kernel(%arg0: i32, %arg1: memref<2x4x256xf32, #tpu.memory_space<vmem>>, %arg2: memref<8x72xf32, #tpu.memory_space<vmem>>, %arg3: memref<9x256xf32, #tpu.memory_space<vmem>>, %arg4: memref<2x8x256xf32, #tpu.memory_space<vmem>>) attributes {dimension_semantics = [#tpu.dimension_semantics<parallel>], iteration_bounds = array<i64: 1>, scalar_prefetch = 0 : i64, scratch_operands = 0 : i64, tpu.core_type = #tpu.core_type<tc>, window_params = [{transform_indices = @transform_0, window_bounds = array<i64: 2, 4, 256>}, {pipeline_mode = #tpu.pipeline_mode<synchronous>, transform_indices = @transform_1, window_bounds = array<i64: 8, 72>}, {pipeline_mode = #tpu.pipeline_mode<synchronous>, transform_indices = @transform_2, window_bounds = array<i64: 9, 256>}, {transform_indices = @transform_3, window_bounds = array<i64: 2, 8, 256>}]} {
    %c0 = arith.constant 0 : index
    %c0_0 = arith.constant 0 : index
    %0 = vector.load %arg3[%c0, %c0_0] : memref<9x256xf32, #tpu.memory_space<vmem>>, vector<9x256xf32>
    %c0_1 = arith.constant 0 : index
    %c0_2 = arith.constant 0 : index
    %c0_3 = arith.constant 0 : index
    %1 = vector.load %arg1[%c0_1, %c0_2, %c0_3] : memref<2x4x256xf32, #tpu.memory_space<vmem>>, vector<1x4x256xf32>
    %2 = vector.shape_cast %1 : vector<1x4x256xf32> to vector<4x256xf32>
    %c1 = arith.constant 1 : index
    %c0_4 = arith.constant 0 : index
    %c0_5 = arith.constant 0 : index
    %3 = vector.load %arg1[%c1, %c0_4, %c0_5] : memref<2x4x256xf32, #tpu.memory_space<vmem>>, vector<1x4x256xf32>
    %4 = vector.shape_cast %3 : vector<1x4x256xf32> to vector<4x256xf32>
    %cst = arith.constant 1.000000e+00 : f32
    %5 = vector.broadcast %cst : f32 to vector<1x512xf32>
    %cst_6 = arith.constant 0.000000e+00 : f32
    %6 = vector.broadcast %cst_6 : f32 to vector<4x512xf32>
    %cst_7 = arith.constant 0.000000e+00 : f32
    %7 = vector.broadcast %cst_7 : f32 to vector<3x512xf32>
    %8 = tpu.concatenate %5, %7 in 0 : vector<1x512xf32>, vector<3x512xf32> -> vector<4x512xf32>
    %9 = vector.extract_strided_slice %0 {offsets = [0, 0], sizes = [1, 256], strides = [1, 1]} : vector<9x256xf32> to vector<1x256xf32>
    %c17_i32 = arith.constant 17 : i32
    %10 = tpu.dynamic_rotate %2 by %c17_i32 dim 1 : vector<4x256xf32>, i32 -> vector<4x256xf32>
    %11 = vector.broadcast %9 : vector<1x256xf32> to vector<4x256xf32>
    %12 = arith.mulf %10, %11 : vector<4x256xf32>
    %c17_i32_8 = arith.constant 17 : i32
    %13 = tpu.dynamic_rotate %4 by %c17_i32_8 dim 1 : vector<4x256xf32>, i32 -> vector<4x256xf32>
    %14 = vector.broadcast %9 : vector<1x256xf32> to vector<4x256xf32>
    %15 = arith.mulf %13, %14 : vector<4x256xf32>
    %16 = tpu.concatenate %12, %15 in 1 : vector<4x256xf32>, vector<4x256xf32> -> vector<4x512xf32>
    %17 = tpu.concatenate %16, %8 in 0 : vector<4x512xf32>, vector<4x512xf32> -> vector<8x512xf32>
    %18 = vector.extract_strided_slice %0 {offsets = [1, 0], sizes = [1, 256], strides = [1, 1]} : vector<9x256xf32> to vector<1x256xf32>
    %c16_i32 = arith.constant 16 : i32
    %19 = tpu.dynamic_rotate %2 by %c16_i32 dim 1 : vector<4x256xf32>, i32 -> vector<4x256xf32>
    %20 = vector.broadcast %18 : vector<1x256xf32> to vector<4x256xf32>
    %21 = arith.mulf %19, %20 : vector<4x256xf32>
    %c16_i32_9 = arith.constant 16 : i32
    %22 = tpu.dynamic_rotate %4 by %c16_i32_9 dim 1 : vector<4x256xf32>, i32 -> vector<4x256xf32>
    %23 = vector.broadcast %18 : vector<1x256xf32> to vector<4x256xf32>
    %24 = arith.mulf %22, %23 : vector<4x256xf32>
    %25 = tpu.concatenate %21, %24 in 1 : vector<4x256xf32>, vector<4x256xf32> -> vector<4x512xf32>
    %26 = tpu.concatenate %25, %6 in 0 : vector<4x512xf32>, vector<4x512xf32> -> vector<8x512xf32>
    %27 = vector.extract_strided_slice %0 {offsets = [2, 0], sizes = [1, 256], strides = [1, 1]} : vector<9x256xf32> to vector<1x256xf32>
    %c15_i32 = arith.constant 15 : i32
    %28 = tpu.dynamic_rotate %2 by %c15_i32 dim 1 : vector<4x256xf32>, i32 -> vector<4x256xf32>
    %29 = vector.broadcast %27 : vector<1x256xf32> to vector<4x256xf32>
    %30 = arith.mulf %28, %29 : vector<4x256xf32>
    %c15_i32_10 = arith.constant 15 : i32
    %31 = tpu.dynamic_rotate %4 by %c15_i32_10 dim 1 : vector<4x256xf32>, i32 -> vector<4x256xf32>
    %32 = vector.broadcast %27 : vector<1x256xf32> to vector<4x256xf32>
    %33 = arith.mulf %31, %32 : vector<4x256xf32>
    %34 = tpu.concatenate %30, %33 in 1 : vector<4x256xf32>, vector<4x256xf32> -> vector<4x512xf32>
    %35 = tpu.concatenate %34, %6 in 0 : vector<4x512xf32>, vector<4x512xf32> -> vector<8x512xf32>
    %36 = vector.extract_strided_slice %0 {offsets = [3, 0], sizes = [1, 256], strides = [1, 1]} : vector<9x256xf32> to vector<1x256xf32>
    %c1_i32 = arith.constant 1 : i32
    %37 = tpu.dynamic_rotate %2 by %c1_i32 dim 1 : vector<4x256xf32>, i32 -> vector<4x256xf32>
    %38 = vector.broadcast %36 : vector<1x256xf32> to vector<4x256xf32>
    %39 = arith.mulf %37, %38 : vector<4x256xf32>
    %c1_i32_11 = arith.constant 1 : i32
    %40 = tpu.dynamic_rotate %4 by %c1_i32_11 dim 1 : vector<4x256xf32>, i32 -> vector<4x256xf32>
    %41 = vector.broadcast %36 : vector<1x256xf32> to vector<4x256xf32>
    %42 = arith.mulf %40, %41 : vector<4x256xf32>
    %43 = tpu.concatenate %39, %42 in 1 : vector<4x256xf32>, vector<4x256xf32> -> vector<4x512xf32>
    %44 = tpu.concatenate %43, %6 in 0 : vector<4x512xf32>, vector<4x512xf32> -> vector<8x512xf32>
    %45 = tpu.concatenate %2, %4 in 1 : vector<4x256xf32>, vector<4x256xf32> -> vector<4x512xf32>
    %46 = tpu.concatenate %45, %6 in 0 : vector<4x512xf32>, vector<4x512xf32> -> vector<8x512xf32>
    %47 = vector.extract_strided_slice %0 {offsets = [5, 0], sizes = [1, 256], strides = [1, 1]} : vector<9x256xf32> to vector<1x256xf32>
    %c255_i32 = arith.constant 255 : i32
    %48 = tpu.dynamic_rotate %2 by %c255_i32 dim 1 : vector<4x256xf32>, i32 -> vector<4x256xf32>
    %49 = vector.broadcast %47 : vector<1x256xf32> to vector<4x256xf32>
    %50 = arith.mulf %48, %49 : vector<4x256xf32>
    %c255_i32_12 = arith.constant 255 : i32
    %51 = tpu.dynamic_rotate %4 by %c255_i32_12 dim 1 : vector<4x256xf32>, i32 -> vector<4x256xf32>
    %52 = vector.broadcast %47 : vector<1x256xf32> to vector<4x256xf32>
    %53 = arith.mulf %51, %52 : vector<4x256xf32>
    %54 = tpu.concatenate %50, %53 in 1 : vector<4x256xf32>, vector<4x256xf32> -> vector<4x512xf32>
    %55 = tpu.concatenate %54, %6 in 0 : vector<4x512xf32>, vector<4x512xf32> -> vector<8x512xf32>
    %56 = vector.extract_strided_slice %0 {offsets = [6, 0], sizes = [1, 256], strides = [1, 1]} : vector<9x256xf32> to vector<1x256xf32>
    %c241_i32 = arith.constant 241 : i32
    %57 = tpu.dynamic_rotate %2 by %c241_i32 dim 1 : vector<4x256xf32>, i32 -> vector<4x256xf32>
    %58 = vector.broadcast %56 : vector<1x256xf32> to vector<4x256xf32>
    %59 = arith.mulf %57, %58 : vector<4x256xf32>
    %c241_i32_13 = arith.constant 241 : i32
    %60 = tpu.dynamic_rotate %4 by %c241_i32_13 dim 1 : vector<4x256xf32>, i32 -> vector<4x256xf32>
    %61 = vector.broadcast %56 : vector<1x256xf32> to vector<4x256xf32>
    %62 = arith.mulf %60, %61 : vector<4x256xf32>
    %63 = tpu.concatenate %59, %62 in 1 : vector<4x256xf32>, vector<4x256xf32> -> vector<4x512xf32>
    %64 = tpu.concatenate %63, %6 in 0 : vector<4x512xf32>, vector<4x512xf32> -> vector<8x512xf32>
    %65 = vector.extract_strided_slice %0 {offsets = [7, 0], sizes = [1, 256], strides = [1, 1]} : vector<9x256xf32> to vector<1x256xf32>
    %c240_i32 = arith.constant 240 : i32
    %66 = tpu.dynamic_rotate %2 by %c240_i32 dim 1 : vector<4x256xf32>, i32 -> vector<4x256xf32>
    %67 = vector.broadcast %65 : vector<1x256xf32> to vector<4x256xf32>
    %68 = arith.mulf %66, %67 : vector<4x256xf32>
    %c240_i32_14 = arith.constant 240 : i32
    %69 = tpu.dynamic_rotate %4 by %c240_i32_14 dim 1 : vector<4x256xf32>, i32 -> vector<4x256xf32>
    %70 = vector.broadcast %65 : vector<1x256xf32> to vector<4x256xf32>
    %71 = arith.mulf %69, %70 : vector<4x256xf32>
    %72 = tpu.concatenate %68, %71 in 1 : vector<4x256xf32>, vector<4x256xf32> -> vector<4x512xf32>
    %73 = tpu.concatenate %72, %6 in 0 : vector<4x512xf32>, vector<4x512xf32> -> vector<8x512xf32>
    %74 = vector.extract_strided_slice %0 {offsets = [8, 0], sizes = [1, 256], strides = [1, 1]} : vector<9x256xf32> to vector<1x256xf32>
    %c239_i32 = arith.constant 239 : i32
    %75 = tpu.dynamic_rotate %2 by %c239_i32 dim 1 : vector<4x256xf32>, i32 -> vector<4x256xf32>
    %76 = vector.broadcast %74 : vector<1x256xf32> to vector<4x256xf32>
    %77 = arith.mulf %75, %76 : vector<4x256xf32>
    %c239_i32_15 = arith.constant 239 : i32
    %78 = tpu.dynamic_rotate %4 by %c239_i32_15 dim 1 : vector<4x256xf32>, i32 -> vector<4x256xf32>
    %79 = vector.broadcast %74 : vector<1x256xf32> to vector<4x256xf32>
    %80 = arith.mulf %78, %79 : vector<4x256xf32>
    %81 = tpu.concatenate %77, %80 in 1 : vector<4x256xf32>, vector<4x256xf32> -> vector<4x512xf32>
    %82 = tpu.concatenate %81, %6 in 0 : vector<4x512xf32>, vector<4x512xf32> -> vector<8x512xf32>
    %83 = tpu.concatenate %17, %26, %35, %44, %46, %55, %64, %73, %82 in 0 : vector<8x512xf32>, vector<8x512xf32>, vector<8x512xf32>, vector<8x512xf32>, vector<8x512xf32>, vector<8x512xf32>, vector<8x512xf32>, vector<8x512xf32>, vector<8x512xf32> -> vector<72x512xf32>
    %c0_16 = arith.constant 0 : index
    %c0_17 = arith.constant 0 : index
    %84 = vector.load %arg2[%c0_16, %c0_17] : memref<8x72xf32, #tpu.memory_space<vmem>>, vector<8x72xf32>
    %cst_18 = arith.constant dense<0.000000e+00> : vector<8x512xf32>
    %85 = tpu.matmul %84, %83, %cst_18 {dimension_numbers = #tpu.dot_dimension_numbers<[1], [0], [0], [1], [0, 0, 1, 1], [], []>} : vector<8x72xf32>, vector<72x512xf32>, vector<8x512xf32> -> vector<8x512xf32>
    %cst_19 = arith.constant 0.000000e+00 : f32
    %86 = vector.broadcast %cst_19 : f32 to vector<8x512xf32>
    %87 = arith.maximumf %85, %86 : vector<8x512xf32>
    %88 = vector.extract_strided_slice %87 {offsets = [0, 0], sizes = [8, 256], strides = [1, 1]} : vector<8x512xf32> to vector<8x256xf32>
    %c0_20 = arith.constant 0 : index
    %c0_21 = arith.constant 0 : index
    %c0_22 = arith.constant 0 : index
    %89 = vector.load %arg4[%c0_20, %c0_21, %c0_22] : memref<2x8x256xf32, #tpu.memory_space<vmem>>, vector<1x8x256xf32>
    %90 = vector.shape_cast %89 : vector<1x8x256xf32> to vector<8x256xf32>
    %91 = vector.shape_cast %88 : vector<8x256xf32> to vector<1x8x256xf32>
    tpu.vector_store %arg4[%c0_20, %c0_21, %c0_22], %91 {strides = array<i32>} : memref<2x8x256xf32, #tpu.memory_space<vmem>>, vector<1x8x256xf32>,
    %92 = vector.extract_strided_slice %87 {offsets = [0, 256], sizes = [8, 256], strides = [1, 1]} : vector<8x512xf32> to vector<8x256xf32>
    %c1_23 = arith.constant 1 : index
    %c0_24 = arith.constant 0 : index
    %c0_25 = arith.constant 0 : index
    %93 = vector.load %arg4[%c1_23, %c0_24, %c0_25] : memref<2x8x256xf32, #tpu.memory_space<vmem>>, vector<1x8x256xf32>
    %94 = vector.shape_cast %93 : vector<1x8x256xf32> to vector<8x256xf32>
    %95 = vector.shape_cast %92 : vector<8x256xf32> to vector<1x8x256xf32>
    tpu.vector_store %arg4[%c1_23, %c0_24, %c0_25], %95 {strides = array<i32>} : memref<2x8x256xf32, #tpu.memory_space<vmem>>, vector<1x8x256xf32>,
    return
  }
  func.func @transform_0(%arg0: i32) -> (i32, i32, i32) {
    %c0_i32 = arith.constant 0 : i32
    %c0_i32_0 = arith.constant 0 : i32
    %c0_i32_1 = arith.constant 0 : i32
    return %arg0, %c0_i32, %c0_i32_0 : i32, i32, i32
  }
  func.func @transform_1(%arg0: i32) -> (i32, i32) {
    %c0_i32 = arith.constant 0 : i32
    %c0_i32_0 = arith.constant 0 : i32
    %c0_i32_1 = arith.constant 0 : i32
    return %c0_i32, %c0_i32_0 : i32, i32
  }
  func.func @transform_2(%arg0: i32) -> (i32, i32) {
    %c0_i32 = arith.constant 0 : i32
    %c0_i32_0 = arith.constant 0 : i32
    %c0_i32_1 = arith.constant 0 : i32
    return %c0_i32, %c0_i32_0 : i32, i32
  }
  func.func @transform_3(%arg0: i32) -> (i32, i32, i32) {
    %c0_i32 = arith.constant 0 : i32
    %c0_i32_0 = arith.constant 0 : i32
    %c0_i32_1 = arith.constant 0 : i32
    return %arg0, %c0_i32, %c0_i32_0 : i32, i32, i32
  }
}

</mosaic_0001>

<llo_original>
// kernel: conv_block_pallas.1
$region0: #{conv_block_pallas.1}
  #allocation0 [shape = 'u32[]', space=smem, size = 0x4, offset = 0x4, fixed_abs, tag = 'smem constant byte address 0x4 - core index']
  #allocation1 [shape = 'u32[144,128]{1,0:T(1,128)}', space=vmem, size = 0x12000, scoped, tag = 'internal scratch']
  %s0 = inlined_call_operand.vmem [shape: f32[2,4,256], index: 0, kind: input, shape index: {}]
  %s1 = inlined_call_operand.vmem [shape: f32[8,72], index: 1, kind: input, shape index: {}]
  %s2 = inlined_call_operand.vmem [shape: f32[9,256], index: 2, kind: input, shape index: {}]
  %s3 = inlined_call_operand.vmem [shape: f32[2,8,256], index: 3, kind: output, shape index: {}]
  %s4 = sld [smem:[#allocation0]]
  $region22: #{conv_block_pallas.1} parent=0
    _
  %s6 = ssub.s32 1, %s4
  %s7 = scalar_select 0, %s6, %s4
  // Predicated region
  $region2: #{conv_block_pallas.1} parent=0 // pred_check
    _
  $region3: #{conv_block_pallas.1} parent=0 // pred_check_branch
    %9 = sbr.rel (0) target = $region5
  $region4: #{conv_block_pallas.1} parent=0 // pred_region
    _
  $region5: #{conv_block_pallas.1} parent=0 // pred_fallthru
    _
  // Predicated region
  $region6: #{conv_block_pallas.1} parent=0 // pred_check
    _
  $region7: #{conv_block_pallas.1} parent=0 // pred_check_branch
    %11 = sbr.rel (0) target = $region9
  $region8: #{conv_block_pallas.1} parent=0 // pred_region
    _
  $region9: #{conv_block_pallas.1} parent=0 // pred_fallthru
    _
  // Predicated region
  $region10: #{conv_block_pallas.1} parent=0 // pred_check
    _
  $region11: #{conv_block_pallas.1} parent=0 // pred_check_branch
    %13 = sbr.rel (0) target = $region13
  $region12: #{conv_block_pallas.1} parent=0 // pred_region
    _
  $region13: #{conv_block_pallas.1} parent=0 // pred_fallthru
    _
  %v14 = vld [vmem:[%s2] sm:$0xff]
  %v15 = vld [vmem:[%s2 + $0x8] sm:$0xff]
  %v16 = vld [vmem:[%s2 + $0x10] sm:$0x1]
  %v17 = vld [vmem:[%s2 + $0x18] sm:$0x1]
  %v18 = vld [vmem:[%s0] sm:$0xff]
  %s19 = scalar_lea.vmem %s0, 8
  %v20 = vld [vmem:[%s19] sm:$0xff]
  %vm21 = vcmask 1040384
  %v22 = vsel %vm21, 1.0, 0.0
  %v24 = vcombine.high %v18, %v18
  %26 = vrot.lane.b32.xlu0 %v18, 17
  %v27 = vpop.permute.xlu0 %26
  %28 = vrot.lane.b32.xlu0 %v24, 17
  %v29 = vpop.permute.xlu0 %28
  %v30 = vlaneseq
  %v31 = vand.u32 %v30, 127
  %vm32 = vcmp.lt.s32.totalorder %v31, 17
  %v33 = vsel %vm32, %v27, %v29
  %v34 = vsel %vm32, %v29, %v27
  %v35 = vlaneseq
  %v36 = vshrl.u32 %v35, 7
  %v37 = vsub.s32 0, %v36
  %v38 = vrot.slane %v14, %v37
  %v39 = vlaneseq
  %v40 = vshrl.u32 %v39, 7
  %v41 = vsub.s32 0, %v40
  %v42 = vrot.slane %v15, %v41
  %v43 = vmul.f32 %v34, %v38
  %v44 = vmul.f32 %v33, %v42
  %v46 = vcombine.high %v20, %v20
  %48 = vrot.lane.b32.xlu0 %v20, 17
  %v49 = vpop.permute.xlu0 %48
  %50 = vrot.lane.b32.xlu0 %v46, 17
  %v51 = vpop.permute.xlu0 %50
  %v52 = vsel %vm32, %v49, %v51
  %v53 = vsel %vm32, %v51, %v49
  %v54 = vmul.f32 %v53, %v38
  %v55 = vmul.f32 %v52, %v42
  %v57 = vrot.slane %v22, 4
  %vm59 = vcmask 1043456
  %v60 = vsel %vm59, %v43, %v57
  %v61 = vsel %vm59, %v44, %v57
  %v62 = vsel %vm59, %v54, %v57
  %v63 = vsel %vm59, %v55, %v57
  %64 = vrot.lane.b32.xlu0 %v18, 16
  %v65 = vpop.permute.xlu0 %64
  %66 = vrot.lane.b32.xlu0 %v24, 16
  %v67 = vpop.permute.xlu0 %66
  %vm68 = vcmp.lt.s32.totalorder %v31, 16
  %v69 = vsel %vm68, %v65, %v67
  %v70 = vsel %vm68, %v67, %v65
  %v71 = vlaneseq
  %v72 = vshrl.u32 %v71, 7
  %v73 = vsub.s32 1, %v72
  %v74 = vrot.slane %v14, %v73
  %v75 = vlaneseq
  %v76 = vshrl.u32 %v75, 7
  %v77 = vsub.s32 1, %v76
  %v78 = vrot.slane %v15, %v77
  %v79 = vmul.f32 %v70, %v74
  %v80 = vmul.f32 %v69, %v78
  %81 = vrot.lane.b32.xlu0 %v20, 16
  %v82 = vpop.permute.xlu0 %81
  %83 = vrot.lane.b32.xlu0 %v46, 16
  %v84 = vpop.permute.xlu0 %83
  %v85 = vsel %vm68, %v82, %v84
  %v86 = vsel %vm68, %v84, %v82
  %v87 = vmul.f32 %v86, %v74
  %v88 = vmul.f32 %v85, %v78
  %v89 = vsel %vm59, %v79, 0.0
  %v90 = vsel %vm59, %v80, 0.0
  %v91 = vsel %vm59, %v87, 0.0
  %v92 = vsel %vm59, %v88, 0.0
  %93 = vrot.lane.b32.xlu0 %v18, 15
  %v94 = vpop.permute.xlu0 %93
  %95 = vrot.lane.b32.xlu0 %v24, 15
  %v96 = vpop.permute.xlu0 %95
  %vm97 = vcmp.lt.s32.totalorder %v31, 15
  %v98 = vsel %vm97, %v94, %v96
  %v99 = vsel %vm97, %v96, %v94
  %v100 = vlaneseq
  %v101 = vshrl.u32 %v100, 7
  %v102 = vsub.s32 2, %v101
  %v103 = vrot.slane %v14, %v102
  %v104 = vlaneseq
  %v105 = vshrl.u32 %v104, 7
  %v106 = vsub.s32 2, %v105
  %v107 = vrot.slane %v15, %v106
  %v108 = vmul.f32 %v99, %v103
  %v109 = vmul.f32 %v98, %v107
  %110 = vrot.lane.b32.xlu0 %v20, 15
  %v111 = vpop.permute.xlu0 %110
  %112 = vrot.lane.b32.xlu0 %v46, 15
  %v113 = vpop.permute.xlu0 %112
  %v114 = vsel %vm97, %v111, %v113
  %v115 = vsel %vm97, %v113, %v111
  %v116 = vmul.f32 %v115, %v103
  %v117 = vmul.f32 %v114, %v107
  %v118 = vsel %vm59, %v108, 0.0
  %v119 = vsel %vm59, %v109, 0.0
  %v120 = vsel %vm59, %v116, 0.0
  %v121 = vsel %vm59, %v117, 0.0
  %122 = vrot.lane.b32.xlu0 %v18, 1
  %v123 = vpop.permute.xlu0 %122
  %124 = vrot.lane.b32.xlu0 %v24, 1
  %v125 = vpop.permute.xlu0 %124
  %vm126 = vcmp.lt.s32.totalorder %v31, 1
  %v127 = vsel %vm126, %v123, %v125
  %v128 = vsel %vm126, %v125, %v123
  %v129 = vlaneseq
  %v130 = vshrl.u32 %v129, 7
  %v131 = vsub.s32 3, %v130
  %v132 = vrot.slane %v14, %v131
  %v133 = vlaneseq
  %v134 = vshrl.u32 %v133, 7
  %v135 = vsub.s32 3, %v134
  %v136 = vrot.slane %v15, %v135
  %v137 = vmul.f32 %v128, %v132
  %v138 = vmul.f32 %v127, %v136
  %139 = vrot.lane.b32.xlu0 %v20, 1
  %v140 = vpop.permute.xlu0 %139
  %141 = vrot.lane.b32.xlu0 %v46, 1
  %v142 = vpop.permute.xlu0 %141
  %v143 = vsel %vm126, %v140, %v142
  %v144 = vsel %vm126, %v142, %v140
  %v145 = vmul.f32 %v144, %v132
  %v146 = vmul.f32 %v143, %v136
  %v147 = vsel %vm59, %v137, 0.0
  %v148 = vsel %vm59, %v138, 0.0
  %v149 = vsel %vm59, %v145, 0.0
  %v150 = vsel %vm59, %v146, 0.0
  %v151 = vsel %vm59, %v18, 0.0
  %v152 = vsel %vm59, %v24, 0.0
  %v153 = vsel %vm59, %v20, 0.0
  %v154 = vsel %vm59, %v46, 0.0
  %155 = vrot.lane.b32.xlu0 %v18, 127
  %v156 = vpop.permute.xlu0 %155
  %157 = vrot.lane.b32.xlu0 %v24, 127
  %v158 = vpop.permute.xlu0 %157
  %vm159 = vcmp.lt.s32.totalorder %v31, 127
  %v160 = vsel %vm159, %v156, %v158
  %v161 = vsel %vm159, %v158, %v156
  %v162 = vlaneseq
  %v163 = vshrl.u32 %v162, 7
  %v164 = vsub.s32 5, %v163
  %v165 = vrot.slane %v14, %v164
  %v166 = vlaneseq
  %v167 = vshrl.u32 %v166, 7
  %v168 = vsub.s32 5, %v167
  %v169 = vrot.slane %v15, %v168
  %v170 = vmul.f32 %v160, %v165
  %v171 = vmul.f32 %v161, %v169
  %172 = vrot.lane.b32.xlu0 %v20, 127
  %v173 = vpop.permute.xlu0 %172
  %174 = vrot.lane.b32.xlu0 %v46, 127
  %v175 = vpop.permute.xlu0 %174
  %v176 = vsel %vm159, %v173, %v175
  %v177 = vsel %vm159, %v175, %v173
  %v178 = vmul.f32 %v176, %v165
  %v179 = vmul.f32 %v177, %v169
  %v180 = vsel %vm59, %v170, 0.0
  %v181 = vsel %vm59, %v171, 0.0
  %v182 = vsel %vm59, %v178, 0.0
  %v183 = vsel %vm59, %v179, 0.0
  %184 = vrot.lane.b32.xlu0 %v18, 113
  %v185 = vpop.permute.xlu0 %184
  %186 = vrot.lane.b32.xlu0 %v24, 113
  %v187 = vpop.permute.xlu0 %186
  %vm188 = vcmp.lt.s32.totalorder %v31, 113
  %v189 = vsel %vm188, %v185, %v187
  %v190 = vsel %vm188, %v187, %v185
  %v191 = vlaneseq
  %v192 = vshrl.u32 %v191, 7
  %v193 = vsub.s32 6, %v192
  %v194 = vrot.slane %v14, %v193
  %v195 = vlaneseq
  %v196 = vshrl.u32 %v195, 7
  %v197 = vsub.s32 6, %v196
  %v198 = vrot.slane %v15, %v197
  %v199 = vmul.f32 %v189, %v194
  %v200 = vmul.f32 %v190, %v198
  %201 = vrot.lane.b32.xlu0 %v20, 113
  %v202 = vpop.permute.xlu0 %201
  %203 = vrot.lane.b32.xlu0 %v46, 113
  %v204 = vpop.permute.xlu0 %203
  %v205 = vsel %vm188, %v202, %v204
  %v206 = vsel %vm188, %v204, %v202
  %v207 = vmul.f32 %v205, %v194
  %v208 = vmul.f32 %v206, %v198
  %v209 = vsel %vm59, %v199, 0.0
  %v210 = vsel %vm59, %v200, 0.0
  %v211 = vsel %vm59, %v207, 0.0
  %v212 = vsel %vm59, %v208, 0.0
  %213 = vrot.lane.b32.xlu0 %v18, 112
  %v214 = vpop.permute.xlu0 %213
  %215 = vrot.lane.b32.xlu0 %v24, 112
  %v216 = vpop.permute.xlu0 %215
  %vm217 = vcmp.lt.s32.totalorder %v31, 112
  %v218 = vsel %vm217, %v214, %v216
  %v219 = vsel %vm217, %v216, %v214
  %v220 = vlaneseq
  %v221 = vshrl.u32 %v220, 7
  %v222 = vsub.s32 7, %v221
  %v223 = vrot.slane %v14, %v222
  %v224 = vlaneseq
  %v225 = vshrl.u32 %v224, 7
  %v226 = vsub.s32 7, %v225
  %v227 = vrot.slane %v15, %v226
  %v228 = vmul.f32 %v218, %v223
  %v229 = vmul.f32 %v219, %v227
  %230 = vrot.lane.b32.xlu0 %v20, 112
  %v231 = vpop.permute.xlu0 %230
  %232 = vrot.lane.b32.xlu0 %v46, 112
  %v233 = vpop.permute.xlu0 %232
  %v234 = vsel %vm217, %v231, %v233
  %v235 = vsel %vm217, %v233, %v231
  %v236 = vmul.f32 %v234, %v223
  %v237 = vmul.f32 %v235, %v227
  %v238 = vsel %vm59, %v228, 0.0
  %v239 = vsel %vm59, %v229, 0.0
  %v240 = vsel %vm59, %v236, 0.0
  %v241 = vsel %vm59, %v237, 0.0
  %242 = vrot.lane.b32.xlu0 %v18, 111
  %v243 = vpop.permute.xlu0 %242
  %244 = vrot.lane.b32.xlu0 %v24, 111
  %v245 = vpop.permute.xlu0 %244
  %vm246 = vcmp.lt.s32.totalorder %v31, 111
  %v247 = vsel %vm246, %v243, %v245
  %v248 = vsel %vm246, %v245, %v243
  %v249 = vlaneseq
  %v250 = vshrl.u32 %v249, 7
  %v251 = vsub.s32 0, %v250
  %v252 = vrot.slane %v16, %v251
  %v253 = vlaneseq
  %v254 = vshrl.u32 %v253, 7
  %v255 = vsub.s32 0, %v254
  %v256 = vrot.slane %v17, %v255
  %v257 = vmul.f32 %v247, %v252
  %v258 = vmul.f32 %v248, %v256
  %259 = vrot.lane.b32.xlu0 %v20, 111
  %v260 = vpop.permute.xlu0 %259
  %261 = vrot.lane.b32.xlu0 %v46, 111
  %v262 = vpop.permute.xlu0 %261
  %v263 = vsel %vm246, %v260, %v262
  %v264 = vsel %vm246, %v262, %v260
  %v265 = vmul.f32 %v263, %v252
  %v266 = vmul.f32 %v264, %v256
  %v267 = vsel %vm59, %v257, 0.0
  %v268 = vsel %vm59, %v258, 0.0
  %v269 = vsel %vm59, %v265, 0.0
  %v270 = vsel %vm59, %v266, 0.0
  %v271 = vld [vmem:[%s1] sm:$0xff]
  %vm272 = vcmask 588800
  %v274 = vsel %vm272, %v271, 0
  %276 = vmatprep.subr.mxu0 %v61
  %277 = vmatpush1.msra.mxu0 %v60
  %278 = vmatprep.subr.mxu0 %v90
  %279 = vmatpush1.msra.mxu0 %v89
  %280 = vmatprep.subr.mxu0 %v119
  %281 = vmatpush1.msra.mxu0 %v118
  %282 = vmatprep.subr.mxu0 %v148
  %283 = vmatpush1.msra.mxu0 %v147
  %284 = vmatprep.subr.mxu0 %v152
  %285 = vmatpush1.msra.mxu0 %v151
  %286 = vmatprep.subr.mxu0 %v181
  %287 = vmatpush1.msra.mxu0 %v180
  %288 = vmatprep.subr.mxu0 %v210
  %289 = vmatpush1.msra.mxu0 %v209
  %290 = vmatprep.subr.mxu0 %v239
  %291 = vmatpush1.msra.mxu0 %v238
  %292 = vmatprep.subr.mxu0 %v268
  %293 = vmatpush1.msra.mxu0 %v267
  %294 = vmatprep.subr.mxu0 0.0
  %295 = vmatpush1.msra.mxu0 0.0
  %296 = vmatprep.subr.mxu0 0.0
  %297 = vmatpush1.msra.mxu0 0.0
  %298 = vmatprep.subr.mxu0 0.0
  %299 = vmatpush1.msra.mxu0 0.0
  %300 = vmatprep.subr.mxu0 0.0
  %301 = vmatpush1.msra.mxu0 0.0
  %302 = vmatprep.subr.mxu0 0.0
  %303 = vmatpush1.msra.mxu0 0.0
  %304 = vmatprep.subr.mxu0 0.0
  %305 = vmatpush1.msra.mxu0 0.0
  %306 = vmatprep.subr.mxu0 0.0
  %307 = vmatpush1.msra.mxu0 0.0
  %308 = vmatprep.subr.mxu0 0.0
  %309 = vmatpush1.msra.mxu0 0.0
  %310 = vmatprep.subr.mxu0 0.0
  %311 = vmatpush1.msra.mxu0 0.0
  %312 = vmatprep.subr.mxu0 0.0
  %313 = vmatpush1.msra.mxu0 0.0
  %314 = vmatprep.subr.mxu0 0.0
  %315 = vmatpush1.msra.mxu0 0.0
  %316 = vmatprep.subr.mxu0 0.0
  %317 = vmatpush1.msra.mxu0 0.0
  %318 = vmatprep.subr.mxu0 0.0
  %319 = vmatpush1.msra.mxu0 0.0
  %320 = vmatprep.subr.mxu0 0.0
  %321 = vmatpush1.msra.mxu0 0.0
  %322 = vmatprep.subr.mxu0 0.0
  %323 = vmatpush1.msra.mxu0 0.0
  %324 = vmatprep.subr.mxu0 0.0
  %325 = vmatpush1.msra.mxu0 0.0
  %326 = vmatprep.subr.mxu0 0.0
  %327 = vmatpush1.msra.mxu0 0.0
  %328 = vmatprep.subr.mxu0 0.0
  %329 = vmatpush1.msra.mxu0 0.0
  %330 = vmatprep.subr.mxu0 0.0
  %331 = vmatpush1.msra.mxu0 0.0
  %332 = vmatprep.subr.mxu0 0.0
  %333 = vmatpush1.msra.mxu0 0.0
  %334 = vmatprep.subr.mxu0 0.0
  %335 = vmatpush1.msra.mxu0 0.0
  %336 = vmatprep.subr.mxu0 0.0
  %337 = vmatpush1.msra.mxu0 0.0
  %338 = vmatprep.subr.mxu0 0.0
  %339 = vmatpush1.msra.mxu0 0.0
  %340 = vmatprep.mubr.f32.mxu0 0.0
  %341 = vmatmul.mubr.f32.gmra.mrb[0].mxu0 %v274
  %v342 = vpop.f32.mrb[0].mxu0
  %v343 = vadd.f32 0.0, %v342
  %v344 = vpop.f32.mrb[0].mxu0
  %v345 = vadd.f32 0.0, %v344
  %346 = vdwg.mxu0
  %347 = vmatprep.subr.mxu0 %v63
  %348 = vmatpush1.msra.mxu0 %v62
  %349 = vmatprep.subr.mxu0 %v92
  %350 = vmatpush1.msra.mxu0 %v91
  %351 = vmatprep.subr.mxu0 %v121
  %352 = vmatpush1.msra.mxu0 %v120
  %353 = vmatprep.subr.mxu0 %v150
  %354 = vmatpush1.msra.mxu0 %v149
  %355 = vmatprep.subr.mxu0 %v154
  %356 = vmatpush1.msra.mxu0 %v153
  %357 = vmatprep.subr.mxu0 %v183
  %358 = vmatpush1.msra.mxu0 %v182
  %359 = vmatprep.subr.mxu0 %v212
  %360 = vmatpush1.msra.mxu0 %v211
  %361 = vmatprep.subr.mxu0 %v241
  %362 = vmatpush1.msra.mxu0 %v240
  %363 = vmatprep.subr.mxu0 %v270
  %364 = vmatpush1.msra.mxu0 %v269
  %365 = vmatprep.subr.mxu0 0.0
  %366 = vmatpush1.msra.mxu0 0.0
  %367 = vmatprep.subr.mxu0 0.0
  %368 = vmatpush1.msra.mxu0 0.0
  %369 = vmatprep.subr.mxu0 0.0
  %370 = vmatpush1.msra.mxu0 0.0
  %371 = vmatprep.subr.mxu0 0.0
  %372 = vmatpush1.msra.mxu0 0.0
  %373 = vmatprep.subr.mxu0 0.0
  %374 = vmatpush1.msra.mxu0 0.0
  %375 = vmatprep.subr.mxu0 0.0
  %376 = vmatpush1.msra.mxu0 0.0
  %377 = vmatprep.subr.mxu0 0.0
  %378 = vmatpush1.msra.mxu0 0.0
  %379 = vmatprep.subr.mxu0 0.0
  %380 = vmatpush1.msra.mxu0 0.0
  %381 = vmatprep.subr.mxu0 0.0
  %382 = vmatpush1.msra.mxu0 0.0
  %383 = vmatprep.subr.mxu0 0.0
  %384 = vmatpush1.msra.mxu0 0.0
  %385 = vmatprep.subr.mxu0 0.0
  %386 = vmatpush1.msra.mxu0 0.0
  %387 = vmatprep.subr.mxu0 0.0
  %388 = vmatpush1.msra.mxu0 0.0
  %389 = vmatprep.subr.mxu0 0.0
  %390 = vmatpush1.msra.mxu0 0.0
  %391 = vmatprep.subr.mxu0 0.0
  %392 = vmatpush1.msra.mxu0 0.0
  %393 = vmatprep.subr.mxu0 0.0
  %394 = vmatpush1.msra.mxu0 0.0
  %395 = vmatprep.subr.mxu0 0.0
  %396 = vmatpush1.msra.mxu0 0.0
  %397 = vmatprep.subr.mxu0 0.0
  %398 = vmatpush1.msra.mxu0 0.0
  %399 = vmatprep.subr.mxu0 0.0
  %400 = vmatpush1.msra.mxu0 0.0
  %401 = vmatprep.subr.mxu0 0.0
  %402 = vmatpush1.msra.mxu0 0.0
  %403 = vmatprep.subr.mxu0 0.0
  %404 = vmatpush1.msra.mxu0 0.0
  %405 = vmatprep.subr.mxu0 0.0
  %406 = vmatpush1.msra.mxu0 0.0
  %407 = vmatprep.subr.mxu0 0.0
  %408 = vmatpush1.msra.mxu0 0.0
  %409 = vmatprep.subr.mxu0 0.0
  %410 = vmatpush1.msra.mxu0 0.0
  %411 = vmatprep.mubr.f32.mxu0 0.0
  %412 = vmatmul.mubr.f32.gmra.mrb[0].mxu0 %v274
  %v413 = vpop.f32.mrb[0].mxu0
  %v414 = vadd.f32 0.0, %v413
  %v415 = vpop.f32.mrb[0].mxu0
  %v416 = vadd.f32 0.0, %v415
  %417 = vdwg.mxu0
  %v418 = vmax.f32 %v343, 0.0
  %v419 = vmax.f32 %v345, 0.0
  %v420 = vmax.f32 %v414, 0.0
  %v421 = vmax.f32 %v416, 0.0
  %422 = vst [vmem:[%s3] sm:$0xff] %v418
  %423 = vst [vmem:[%s3 + $0x8] sm:$0xff] %v419
  %s424 = scalar_lea.vmem %s3, 16
  %425 = vst [vmem:[%s424] sm:$0xff] %v420
  %426 = vst [vmem:[%s424 + $0x8] sm:$0xff] %v421
  // Predicated region
  $region14: #{conv_block_pallas.1} parent=0 // pred_check
    _
  $region15: #{conv_block_pallas.1} parent=0 // pred_check_branch
    %428 = sbr.rel (0) target = $region17
  $region16: #{conv_block_pallas.1} parent=0 // pred_region
    _
  $region17: #{conv_block_pallas.1} parent=0 // pred_fallthru
    _
  // Predicated region
  $region18: #{conv_block_pallas.1} parent=0 // pred_check
    _
  $region19: #{conv_block_pallas.1} parent=0 // pred_check_branch
    %430 = sbr.rel (0) target = $region21
  $region20: #{conv_block_pallas.1} parent=0 // pred_region
    _
  $region21: #{conv_block_pallas.1} parent=0 // pred_fallthru
    _

</llo_original>
